<compile_context>
chip_gen: v7x
topology: tpu7x:2x2x1
jax: 0.10.0
libtpu: 0.0.40
codegen_flags: <defaults>
</compile_context>

<pallas_src>
import functools
import math

import jax
import jax.numpy as jnp
from jax.experimental import pallas as pl
from jax.experimental.pallas import tpu as pltpu

_INV_SQRT2 = 1.0 / math.sqrt(2.0)


def _gelu_exact(h):
    # torch.nn.GELU(approximate='none'); erf goes to the EUP slot.
    return 0.5 * h * (1.0 + jax.lax.erf(h * jnp.float32(_INV_SQRT2)))


def _ff_kernel_resident(x_ref, w1_ref, b1_ref, w2_ref, b2_ref, o_ref):
    """Whole hidden dim in one grid step: weights resident, no scratch."""
    h = jnp.dot(x_ref[...], w1_ref[...], preferred_element_type=jnp.float32)
    h = _gelu_exact(h + b1_ref[...].astype(jnp.float32))
    y = jnp.dot(h.astype(w2_ref.dtype), w2_ref[...],
                preferred_element_type=jnp.float32)
    o_ref[...] = (y + b2_ref[...].astype(jnp.float32)).astype(o_ref.dtype)
    # TODO(synk): training-mode dropout (config.dropout) omitted — identity in eval.


def _ff_kernel_chunked(x_ref, w1_ref, b1_ref, w2_ref, b2_ref, o_ref, acc_ref):
    """Hidden dim chunked along grid axis 1 (reduction, 'arbitrary')."""
    hk = pl.program_id(1)

    @pl.when(hk == 0)
    def _():
        # Seed the accumulator with the output bias: saves the epilogue add.
        acc_ref[...] = jnp.broadcast_to(b2_ref[...].astype(jnp.float32),
                                        acc_ref.shape)

    h = jnp.dot(x_ref[...], w1_ref[...], preferred_element_type=jnp.float32)
    h = _gelu_exact(h + b1_ref[...].astype(jnp.float32))
    acc_ref[...] += jnp.dot(h.astype(w2_ref.dtype), w2_ref[...],
                            preferred_element_type=jnp.float32)

    @pl.when(hk == pl.num_programs(1) - 1)
    def _():
        o_ref[...] = acc_ref[...].astype(o_ref.dtype)


def _round_up(x, m):
    return ((x + m - 1) // m) * m


def _vmem_capacity_bytes():
    try:
        info = pltpu.get_tpu_info()
        cap = int(getattr(info, "vmem_capacity_bytes", 0))
        if cap > 0:
            return cap
    except Exception:
        pass
    return 64 << 20  # v7x per-TensorCore VMEM: conservative on every chip.


def _vmem_footprint(bm, bh, C, xbytes, wbytes, resident):
    f = 4 * bm * C * xbytes            # x + out tiles (double-buffered)
    f += 4 * bh * C * wbytes           # W1 + W2 chunks (double-buffered)
    f += 16 * (bh + C) * wbytes        # b1 / b2, sublane-padded, double-buffered
    if not resident:
        f += bm * C * 4                # f32 accumulator scratch
    return f


def _pick_bm(M, target, sub_m):
    """Large, MXU-aligned row tile; prefer an exact divisor of M (no pad)."""
    if M <= target:
        return _round_up(M, sub_m)
    bm = (target // 256) * 256
    while bm >= 256:
        if M % bm == 0:
            return bm
        bm -= 256
    return _round_up(target, sub_m)    # ragged M: padding fallback


def _plan_tiling(M, C, H, xbytes, wbytes, budget, sub_m, block_m, block_h):
    """Returns (bm, bh, resident)."""
    target_m = 512 if block_m is None else block_m
    bm0 = _pick_bm(M, target_m, sub_m)
    bm_floor = _round_up(min(M, 256), sub_m)

    cands = sorted({bm0, min(bm0, 512), min(bm0, 256), bm_floor}, reverse=True)
    bm_cands = [b for b in cands if b >= bm_floor] or [bm_floor]

    # Explicit hidden-tile override (also used to exercise the chunked path).
    if block_h is not None and block_h < H and H % block_h == 0:
        return bm_cands[0], block_h, False

    # 1) Weight-resident fast path (biggest lever: weights DMA'd exactly once).
    for bm in bm_cands:
        if _vmem_footprint(bm, H, C, xbytes, wbytes, True) <= budget:
            return bm, H, True

    # 2) Chunked path: largest multiple-of-128 divisor of H that fits; shrink
    #    bh before bm (weight re-stream traffic scales with n_m, not n_h).
    for bm in bm_cands:
        best = None
        d = 128
        while d <= H:
            if H % d == 0 and _vmem_footprint(bm, d, C, xbytes, wbytes,
                                              False) <= budget:
                best = d
            d += 128
        if best is not None:
            return bm, best, False

    # 3) Last resort (H with no multiple-of-128 divisor, or a tiny budget).
    bm = bm_cands[-1]
    d = 128
    while d <= H:
        if H % d == 0:
            return bm, d, False
        d += 128
    return bm, H, True


@functools.partial(jax.jit, static_argnames=("block_m", "block_h"))
def feed_forward(x, w1, b1, w2, b2, *, block_m=None, block_h=None):
    """x: (B, T, C); w1: (C, 4C); b1: (4C,); w2: (4C, C); b2: (C,)."""
    B, T, C = x.shape
    H = w1.shape[1]
    M = B * T

    xbytes = jnp.dtype(x.dtype).itemsize
    wbytes = jnp.dtype(w1.dtype).itemsize
    sub_m = {4: 8, 2: 16, 1: 32}.get(xbytes, 8)   # dtype sublane packing

    vmem_cap = _vmem_capacity_bytes()
    budget = max(vmem_cap - (8 << 20), 24 << 20)  # headroom for compiler scratch

    bm, bh, resident = _plan_tiling(M, C, H, xbytes, wbytes, budget, sub_m,
                                    block_m, block_h)

    n_m = pl.cdiv(M, bm)
    n_h = H // bh
    M_pad = n_m * bm

    x2d = x.reshape(M, C)
    if M_pad != M:
        # Ragged tail only; _pick_bm avoids this whenever M has an aligned divisor.
        x2d = jnp.pad(x2d, ((0, M_pad - M), (0, 0)))
    b1_2d = b1.reshape(1, H)
    b2_2d = b2.reshape(1, C)

    needed = _vmem_footprint(bm, bh, C, xbytes, wbytes, resident)
    vmem_limit = int(min(max(int(needed * 1.25) + (4 << 20), 32 << 20),
                         vmem_cap - (4 << 20)))

    weight_streams = 1 if resident else n_m
    cost = pl.CostEstimate(
        flops=4 * M_pad * C * H,                              # two matmuls
        transcendentals=M_pad * H,                            # erf
        bytes_accessed=int(2 * M * C * xbytes
                           + weight_streams * (2 * C * H + H + C) * wbytes),
    )

    if resident:
        grid_spec = pltpu.PrefetchScalarGridSpec(
            num_scalar_prefetch=0,
            grid=(n_m,),
            in_specs=[
                pl.BlockSpec((bm, C), lambda i: (i, 0)),   # x row tile
                pl.BlockSpec((C, H), lambda i: (0, 0)),    # W1 (constant -> one DMA)
                pl.BlockSpec((1, H), lambda i: (0, 0)),    # b1 (constant -> one DMA)
                pl.BlockSpec((H, C), lambda i: (0, 0)),    # W2 (constant -> one DMA)
                pl.BlockSpec((1, C), lambda i: (0, 0)),    # b2 (constant -> one DMA)
            ],
            out_specs=pl.BlockSpec((bm, C), lambda i: (i, 0)),
            scratch_shapes=[],
        )
        kernel = _ff_kernel_resident
        dims = ("parallel",)
    else:
        grid_spec = pltpu.PrefetchScalarGridSpec(
            num_scalar_prefetch=0,
            grid=(n_m, n_h),                               # reduction axis last
            in_specs=[
                pl.BlockSpec((bm, C), lambda i, k: (i, 0)),   # x row tile
                pl.BlockSpec((C, bh), lambda i, k: (0, k)),   # W1 hidden chunk
                pl.BlockSpec((1, bh), lambda i, k: (0, k)),   # b1 hidden chunk
                pl.BlockSpec((bh, C), lambda i, k: (k, 0)),   # W2 hidden chunk
                pl.BlockSpec((1, C), lambda i, k: (0, 0)),    # b2 (fetched once)
            ],
            out_specs=pl.BlockSpec((bm, C), lambda i, k: (i, 0)),
            scratch_shapes=[pltpu.VMEM((bm, C), jnp.float32)],
        )
        kernel = _ff_kernel_chunked
        dims = ("parallel", "arbitrary")

    out2d = pl.pallas_call(
        kernel,
        out_shape=jax.ShapeDtypeStruct((M_pad, C), x.dtype),
        grid_spec=grid_spec,
        compiler_params=pltpu.CompilerParams(
            dimension_semantics=dims,
            vmem_limit_bytes=vmem_limit,
        ),
        cost_estimate=cost,
    )(x2d, w1, b1_2d, w2, b2_2d)

    if M_pad != M:
        out2d = out2d[:M]
    return out2d.reshape(B, T, C)


def _init_linear(key, fan_in, fan_out, dtype=jnp.float32):
    # PyTorch nn.Linear default init: U(-1/sqrt(fan_in), 1/sqrt(fan_in)).
    kw, kb = jax.random.split(key)
    bound = 1.0 / math.sqrt(fan_in)
    w = jax.random.uniform(kw, (fan_in, fan_out), jnp.float32, -bound, bound)
    b = jax.random.uniform(kb, (fan_out,), jnp.float32, -bound, bound)
    return w.astype(dtype), b.astype(dtype)


def _reference(x, w1, b1, w2, b2):
    hp = jax.lax.Precision.HIGHEST
    x32 = x.astype(jnp.float32)
    h = jnp.dot(x32, w1.astype(jnp.float32), precision=hp) + b1.astype(jnp.float32)
    h = 0.5 * h * (1.0 + jax.lax.erf(h * _INV_SQRT2))
    y = jnp.dot(h, w2.astype(jnp.float32), precision=hp) + b2.astype(jnp.float32)
    return y.astype(x.dtype)


if __name__ == "__main__":
    # Test 1: tiny GPT config (B=2, T=8, n_embd=32 -> hidden=128), f32.
    # Weight-resident path, single M tile, no padding.
    B, T, C = 2, 8, 32
    H = 4 * C
    kx, k1, k2 = jax.random.split(jax.random.PRNGKey(0), 3)
    x = jax.random.normal(kx, (B, T, C), jnp.float32)
    w1, b1 = _init_linear(k1, C, H)
    w2, b2 = _init_linear(k2, H, C)
    out = jax.block_until_ready(feed_forward(x, w1, b1, w2, b2))
    ref = _reference(x, w1, b1, w2, b2)
    assert out.shape == (B, T, C)
    assert jnp.allclose(out, ref, atol=1e-4, rtol=1e-4), "mismatch (test 1)"

    # Test 2: exercises the ragged-M padding fallback (B*T=42 -> 48), f32.
    B2, T2, C2 = 2, 21, 256
    H2 = 4 * C2
    kx2, k12, k22 = jax.random.split(jax.random.PRNGKey(1), 3)
    x2 = jax.random.normal(kx2, (B2, T2, C2), jnp.float32)
    w1b, b1b = _init_linear(k12, C2, H2)
    w2b, b2b = _init_linear(k22, H2, C2)
    out2 = jax.block_until_ready(feed_forward(x2, w1b, b1b, w2b, b2b))
    ref2 = _reference(x2, w1b, b1b, w2b, b2b)
    assert out2.shape == (B2, T2, C2)
    assert jnp.allclose(out2, ref2, atol=5e-4, rtol=5e-4), "mismatch (test 2)"

    # Test 3: force the chunked (hidden-dim streaming) path via block_h
    # (H=512 split into 4 chunks of 128, f32 accumulator seeded with b2).
    B3, T3, C3 = 1, 128, 128
    H3 = 4 * C3
    kx3, k13, k23 = jax.random.split(jax.random.PRNGKey(2), 3)
    x3 = jax.random.normal(kx3, (B3, T3, C3), jnp.float32)
    w1c, b1c = _init_linear(k13, C3, H3)
    w2c, b2c = _init_linear(k23, H3, C3)
    out3 = jax.block_until_ready(feed_forward(x3, w1c, b1c, w2c, b2c, block_h=128))
    ref3 = _reference(x3, w1c, b1c, w2c, b2c)
    assert out3.shape == (B3, T3, C3)
    assert jnp.allclose(out3, ref3, atol=5e-4, rtol=5e-4), "mismatch (test 3)"

    # Test 4: bf16 mixed-precision path (native-dtype MXU, f32 accumulation).
    B4, T4, C4 = 2, 16, 128
    H4 = 4 * C4
    kx4, k14, k24 = jax.random.split(jax.random.PRNGKey(3), 3)
    x4 = jax.random.normal(kx4, (B4, T4, C4), jnp.bfloat16)
    w1d, b1d = _init_linear(k14, C4, H4, jnp.bfloat16)
    w2d, b2d = _init_linear(k24, H4, C4, jnp.bfloat16)
    out4 = jax.block_until_ready(feed_forward(x4, w1d, b1d, w2d, b2d))
    ref4 = _reference(x4, w1d, b1d, w2d, b2d)
    assert out4.shape == (B4, T4, C4)
    assert jnp.allclose(out4.astype(jnp.float32), ref4.astype(jnp.float32),
                        atol=1.5e-2, rtol=1.5e-2), "mismatch (test 4)"

    print("KERNEL_OK")
</pallas_src>

<mosaic_0001>
module attributes {stable_mosaic.version = 11 : i64} {
  func.func @_ff_kernel_resident(%arg0: i32, %arg1: memref<16x32xf32, #tpu.memory_space<vmem>>, %arg2: memref<32x128xf32, #tpu.memory_space<vmem>>, %arg3: memref<1x128xf32, #tpu.memory_space<vmem>>, %arg4: memref<128x32xf32, #tpu.memory_space<vmem>>, %arg5: memref<1x32xf32, #tpu.memory_space<vmem>>, %arg6: memref<16x32xf32, #tpu.memory_space<vmem>>) attributes {dimension_semantics = [#tpu.dimension_semantics<parallel>], iteration_bounds = array<i64: 1>, scalar_prefetch = 0 : i64, scratch_operands = 0 : i64, tpu.core_type = #tpu.core_type<tc>, window_params = [{transform_indices = @transform_0, window_bounds = array<i64: 16, 32>}, {pipeline_mode = #tpu.pipeline_mode<synchronous>, transform_indices = @transform_1, window_bounds = array<i64: 32, 128>}, {pipeline_mode = #tpu.pipeline_mode<synchronous>, transform_indices = @transform_2, window_bounds = array<i64: 1, 128>}, {pipeline_mode = #tpu.pipeline_mode<synchronous>, transform_indices = @transform_3, window_bounds = array<i64: 128, 32>}, {pipeline_mode = #tpu.pipeline_mode<synchronous>, transform_indices = @transform_4, window_bounds = array<i64: 1, 32>}, {transform_indices = @transform_5, window_bounds = array<i64: 16, 32>}]} {
    %c0 = arith.constant 0 : index
    %c0_0 = arith.constant 0 : index
    %0 = vector.load %arg1[%c0, %c0_0] : memref<16x32xf32, #tpu.memory_space<vmem>>, vector<16x32xf32>
    %c0_1 = arith.constant 0 : index
    %c0_2 = arith.constant 0 : index
    %1 = vector.load %arg2[%c0_1, %c0_2] : memref<32x128xf32, #tpu.memory_space<vmem>>, vector<32x128xf32>
    %cst = arith.constant dense<0.000000e+00> : vector<16x128xf32>
    %2 = tpu.matmul %0, %1, %cst {dimension_numbers = #tpu.dot_dimension_numbers<[1], [0], [0], [1], [0, 0, 1, 1], [], []>} : vector<16x32xf32>, vector<32x128xf32>, vector<16x128xf32> -> vector<16x128xf32>
    %c0_3 = arith.constant 0 : index
    %c0_4 = arith.constant 0 : index
    %3 = vector.load %arg3[%c0_3, %c0_4] : memref<1x128xf32, #tpu.memory_space<vmem>>, vector<1x128xf32>
    %4 = vector.broadcast %3 : vector<1x128xf32> to vector<16x128xf32>
    %5 = arith.addf %2, %4 : vector<16x128xf32>
    %cst_5 = arith.constant 5.000000e-01 : f32
    %6 = vector.broadcast %cst_5 : f32 to vector<16x128xf32>
    %7 = arith.mulf %6, %5 : vector<16x128xf32>
    %cst_6 = arith.constant 0.707106769 : f32
    %8 = vector.broadcast %cst_6 : f32 to vector<16x128xf32>
    %9 = arith.mulf %5, %8 : vector<16x128xf32>
    %10 = math.erf %9 : vector<16x128xf32>
    %cst_7 = arith.constant 1.000000e+00 : f32
    %11 = vector.broadcast %cst_7 : f32 to vector<16x128xf32>
    %12 = arith.addf %11, %10 : vector<16x128xf32>
    %13 = arith.mulf %7, %12 : vector<16x128xf32>
    %c0_8 = arith.constant 0 : index
    %c0_9 = arith.constant 0 : index
    %14 = vector.load %arg4[%c0_8, %c0_9] : memref<128x32xf32, #tpu.memory_space<vmem>>, vector<128x32xf32>
    %cst_10 = arith.constant dense<0.000000e+00> : vector<16x32xf32>
    %15 = tpu.matmul %13, %14, %cst_10 {dimension_numbers = #tpu.dot_dimension_numbers<[1], [0], [0], [1], [0, 0, 1, 1], [], []>} : vector<16x128xf32>, vector<128x32xf32>, vector<16x32xf32> -> vector<16x32xf32>
    %c0_11 = arith.constant 0 : index
    %c0_12 = arith.constant 0 : index
    %16 = vector.load %arg5[%c0_11, %c0_12] : memref<1x32xf32, #tpu.memory_space<vmem>>, vector<1x32xf32>
    %17 = vector.broadcast %16 : vector<1x32xf32> to vector<16x32xf32>
    %18 = arith.addf %15, %17 : vector<16x32xf32>
    %c0_13 = arith.constant 0 : index
    %c0_14 = arith.constant 0 : index
    %19 = vector.load %arg6[%c0_13, %c0_14] : memref<16x32xf32, #tpu.memory_space<vmem>>, vector<16x32xf32>
    tpu.vector_store %arg6[%c0_13, %c0_14], %18 {strides = array<i32>} : memref<16x32xf32, #tpu.memory_space<vmem>>, vector<16x32xf32>,
    return
  }
  func.func @transform_0(%arg0: i32) -> (i32, i32) {
    %c0_i32 = arith.constant 0 : i32
    %c0_i32_0 = arith.constant 0 : i32
    return %arg0, %c0_i32 : i32, i32
  }
  func.func @transform_1(%arg0: i32) -> (i32, i32) {
    %c0_i32 = arith.constant 0 : i32
    %c0_i32_0 = arith.constant 0 : i32
    %c0_i32_1 = arith.constant 0 : i32
    return %c0_i32, %c0_i32_0 : i32, i32
  }
  func.func @transform_2(%arg0: i32) -> (i32, i32) {
    %c0_i32 = arith.constant 0 : i32
    %c0_i32_0 = arith.constant 0 : i32
    %c0_i32_1 = arith.constant 0 : i32
    return %c0_i32, %c0_i32_0 : i32, i32
  }
  func.func @transform_3(%arg0: i32) -> (i32, i32) {
    %c0_i32 = arith.constant 0 : i32
    %c0_i32_0 = arith.constant 0 : i32
    %c0_i32_1 = arith.constant 0 : i32
    return %c0_i32, %c0_i32_0 : i32, i32
  }
  func.func @transform_4(%arg0: i32) -> (i32, i32) {
    %c0_i32 = arith.constant 0 : i32
    %c0_i32_0 = arith.constant 0 : i32
    %c0_i32_1 = arith.constant 0 : i32
    return %c0_i32, %c0_i32_0 : i32, i32
  }
  func.func @transform_5(%arg0: i32) -> (i32, i32) {
    %c0_i32 = arith.constant 0 : i32
    %c0_i32_0 = arith.constant 0 : i32
    return %arg0, %c0_i32 : i32, i32
  }
}

</mosaic_0001>

<llo_original>
// kernel: feed_forward.1
$region0: #{feed_forward.1}
  #allocation0 [shape = 'u32[]', space=smem, size = 0x4, offset = 0x4, fixed_abs, tag = 'smem constant byte address 0x4 - core index']
  #allocation1 [shape = 'u32[144,128]{1,0:T(1,128)}', space=vmem, size = 0x12000, scoped, tag = 'internal scratch']
  %s0 = inlined_call_operand.vmem [shape: f32[16,32], index: 0, kind: input, shape index: {}]
  %s1 = inlined_call_operand.vmem [shape: f32[32,128], index: 1, kind: input, shape index: {}]
  %s2 = inlined_call_operand.vmem [shape: f32[1,128], index: 2, kind: input, shape index: {}]
  %s3 = inlined_call_operand.vmem [shape: f32[128,32], index: 3, kind: input, shape index: {}]
  %s4 = inlined_call_operand.vmem [shape: f32[1,32], index: 4, kind: input, shape index: {}]
  %s5 = inlined_call_operand.hbm [shape: f32[16,32], index: 5, kind: output, shape index: {}]
  %s6 = sld [smem:[#allocation0]]
  $region30: #{feed_forward.1} parent=0
    _
  %s8 = ssub.s32 1, %s6
  %s9 = scalar_select 0, %s8, %s6
  $region1: #{feed_forward.1} parent=0
    #allocation2 [shape = 'u8[8192]{0}', space=vmem, size = 0x2000, scoped, tag = 'output window, operand 0, single buffered']
    #allocation3 [shape = 's32[1]{0}', space=sflag, size = 0x4, scoped, tag = 'scoped memory for feed_forward.1']
    %10 = vsyncpa [#allocation3], 0
    // Predicated region
    $region2: #{feed_forward.1} parent=1 // pred_check
      _
    $region3: #{feed_forward.1} parent=1 // pred_check_branch
      %12 = sbr.rel (0) target = $region5
    $region4: #{feed_forward.1} parent=1 // pred_region
      _
    $region5: #{feed_forward.1} parent=1 // pred_fallthru
      _
    // Predicated region
    $region6: #{feed_forward.1} parent=1 // pred_check
      _
    $region7: #{feed_forward.1} parent=1 // pred_check_branch
      %14 = sbr.rel (0) target = $region9
    $region8: #{feed_forward.1} parent=1 // pred_region
      _
    $region9: #{feed_forward.1} parent=1 // pred_fallthru
      _
    // Predicated region
    $region10: #{feed_forward.1} parent=1 // pred_check
      _
    $region11: #{feed_forward.1} parent=1 // pred_check_branch
      %16 = sbr.rel (0) target = $region13
    $region12: #{feed_forward.1} parent=1 // pred_region
      _
    $region13: #{feed_forward.1} parent=1 // pred_fallthru
      _
    // Predicated region
    $region14: #{feed_forward.1} parent=1 // pred_check
      _
    $region15: #{feed_forward.1} parent=1 // pred_check_branch
      %18 = sbr.rel (0) target = $region17
    $region16: #{feed_forward.1} parent=1 // pred_region
      _
    $region17: #{feed_forward.1} parent=1 // pred_fallthru
      _
    // Predicated region
    $region18: #{feed_forward.1} parent=1 // pred_check
      _
    $region19: #{feed_forward.1} parent=1 // pred_check_branch
      %20 = sbr.rel (0) target = $region21
    $region20: #{feed_forward.1} parent=1 // pred_region
      _
    $region21: #{feed_forward.1} parent=1 // pred_fallthru
      _
    %v21 = vld [vmem:[%s0] sm:$0xff]
    %v22 = vld [vmem:[%s0 + $0x8] sm:$0xff]
    %v23 = vld [vmem:[%s1] sm:$0xff]
    %v24 = vld [vmem:[%s1 + $0x8] sm:$0xff]
    %v25 = vld [vmem:[%s1 + $0x10] sm:$0xff]
    %v26 = vld [vmem:[%s1 + $0x18] sm:$0xff]
    %v27 = vld [vmem:[%s2] sm:$0x1]
    %v29 = vlaneseq
    %v30 = vshrl.u32 %v29, 7
    %v31 = vsub.s32 0, %v30
    %v32 = vrot.slane %v27, %v31
    %vm34 = vcmask 261120
    %v36 = vsel %vm34, %v21, 0
    %v39 = vsel %vm34, %v22, 0
    %41 = vmatprep.subr.mxu0 0.0
    %42 = vmatpush1.msra.mxu0 %v23
    %43 = vmatprep.subr.mxu0 0.0
    %44 = vmatpush1.msra.mxu0 %v24
    %45 = vmatprep.subr.mxu0 0.0
    %46 = vmatpush1.msra.mxu0 %v25
    %47 = vmatprep.subr.mxu0 0.0
    %48 = vmatpush1.msra.mxu0 %v26
    %49 = vmatprep.subr.mxu0 0.0
    %50 = vmatpush1.msra.mxu0 0.0
    %51 = vmatprep.subr.mxu0 0.0
    %52 = vmatpush1.msra.mxu0 0.0
    %53 = vmatprep.subr.mxu0 0.0
    %54 = vmatpush1.msra.mxu0 0.0
    %55 = vmatprep.subr.mxu0 0.0
    %56 = vmatpush1.msra.mxu0 0.0
    %57 = vmatprep.subr.mxu0 0.0
    %58 = vmatpush1.msra.mxu0 0.0
    %59 = vmatprep.subr.mxu0 0.0
    %60 = vmatpush1.msra.mxu0 0.0
    %61 = vmatprep.subr.mxu0 0.0
    %62 = vmatpush1.msra.mxu0 0.0
    %63 = vmatprep.subr.mxu0 0.0
    %64 = vmatpush1.msra.mxu0 0.0
    %65 = vmatprep.subr.mxu0 0.0
    %66 = vmatpush1.msra.mxu0 0.0
    %67 = vmatprep.subr.mxu0 0.0
    %68 = vmatpush1.msra.mxu0 0.0
    %69 = vmatprep.subr.mxu0 0.0
    %70 = vmatpush1.msra.mxu0 0.0
    %71 = vmatprep.subr.mxu0 0.0
    %72 = vmatpush1.msra.mxu0 0.0
    %73 = vmatprep.subr.mxu0 0.0
    %74 = vmatpush1.msra.mxu0 0.0
    %75 = vmatprep.subr.mxu0 0.0
    %76 = vmatpush1.msra.mxu0 0.0
    %77 = vmatprep.subr.mxu0 0.0
    %78 = vmatpush1.msra.mxu0 0.0
    %79 = vmatprep.subr.mxu0 0.0
    %80 = vmatpush1.msra.mxu0 0.0
    %81 = vmatprep.subr.mxu0 0.0
    %82 = vmatpush1.msra.mxu0 0.0
    %83 = vmatprep.subr.mxu0 0.0
    %84 = vmatpush1.msra.mxu0 0.0
    %85 = vmatprep.subr.mxu0 0.0
    %86 = vmatpush1.msra.mxu0 0.0
    %87 = vmatprep.subr.mxu0 0.0
    %88 = vmatpush1.msra.mxu0 0.0
    %89 = vmatprep.subr.mxu0 0.0
    %90 = vmatpush1.msra.mxu0 0.0
    %91 = vmatprep.subr.mxu0 0.0
    %92 = vmatpush1.msra.mxu0 0.0
    %93 = vmatprep.subr.mxu0 0.0
    %94 = vmatpush1.msra.mxu0 0.0
    %95 = vmatprep.subr.mxu0 0.0
    %96 = vmatpush1.msra.mxu0 0.0
    %97 = vmatprep.subr.mxu0 0.0
    %98 = vmatpush1.msra.mxu0 0.0
    %99 = vmatprep.subr.mxu0 0.0
    %100 = vmatpush1.msra.mxu0 0.0
    %101 = vmatprep.subr.mxu0 0.0
    %102 = vmatpush1.msra.mxu0 0.0
    %103 = vmatprep.subr.mxu0 0.0
    %104 = vmatpush1.msra.mxu0 0.0
    %105 = vmatprep.mubr.f32.mxu0 0.0
    %106 = vmatmul.mubr.f32.gmra.mrb[0].mxu0 %v36
    %v107 = vpop.f32.mrb[0].mxu0
    %v108 = vadd.f32 %v32, %v107
    %v109 = vpop.f32.mrb[0].mxu0
    %110 = vmatprep.mubr.f32.mxu0 0.0
    %111 = vmatmul.mubr.f32.gmra.mrb[0].mxu0 %v39
    %v112 = vpop.f32.mrb[0].mxu0
    %v113 = vadd.f32 %v32, %v112
    %v114 = vpop.f32.mrb[0].mxu0
    %115 = vdwg.mxu0
    %v116 = vmul.f32 %v108, 0.5
    %v117 = vmul.f32 %v113, 0.5
    %v118 = vmul.f32 %v108, 0.70710677
    %v119 = vmul.f32 %v113, 0.70710677
    %v120 = verf.f32.pop %v118
    %v121 = verf.f32.pop %v119
    %v122 = vadd.f32 %v120, 1.0
    %v123 = vadd.f32 %v121, 1.0
    %v124 = vmul.f32 %v116, %v122
    %v125 = vmul.f32 %v117, %v123
    %v126 = vld [vmem:[%s3] sm:$0xff]
    %v127 = vld [vmem:[%s3 + $0x8] sm:$0xff]
    %v128 = vld [vmem:[%s3 + $0x10] sm:$0xff]
    %v129 = vld [vmem:[%s3 + $0x18] sm:$0xff]
    %v130 = vld [vmem:[%s3 + $0x20] sm:$0xff]
    %v131 = vld [vmem:[%s3 + $0x28] sm:$0xff]
    %v132 = vld [vmem:[%s3 + $0x30] sm:$0xff]
    %v133 = vld [vmem:[%s3 + $0x38] sm:$0xff]
    %v134 = vld [vmem:[%s3 + $0x40] sm:$0xff]
    %v135 = vld [vmem:[%s3 + $0x48] sm:$0xff]
    %v136 = vld [vmem:[%s3 + $0x50] sm:$0xff]
    %v137 = vld [vmem:[%s3 + $0x58] sm:$0xff]
    %v138 = vld [vmem:[%s3 + $0x60] sm:$0xff]
    %v139 = vld [vmem:[%s3 + $0x68] sm:$0xff]
    %v140 = vld [vmem:[%s3 + $0x70] sm:$0xff]
    %v141 = vld [vmem:[%s3 + $0x78] sm:$0xff]
    %v142 = vld [vmem:[%s4] sm:$0x1]
    %v144 = vlaneseq
    %v145 = vshrl.u32 %v144, 7
    %v146 = vsub.s32 0, %v145
    %v147 = vrot.slane %v142, %v146
    %149 = vmatprep.subr.mxu0 0.0
    %150 = vmatpush1.msra.mxu0 %v126
    %151 = vmatprep.subr.mxu0 0.0
    %152 = vmatpush1.msra.mxu0 %v127
    %153 = vmatprep.subr.mxu0 0.0
    %154 = vmatpush1.msra.mxu0 %v128
    %155 = vmatprep.subr.mxu0 0.0
    %156 = vmatpush1.msra.mxu0 %v129
    %157 = vmatprep.subr.mxu0 0.0
    %158 = vmatpush1.msra.mxu0 %v130
    %159 = vmatprep.subr.mxu0 0.0
    %160 = vmatpush1.msra.mxu0 %v131
    %161 = vmatprep.subr.mxu0 0.0
    %162 = vmatpush1.msra.mxu0 %v132
    %163 = vmatprep.subr.mxu0 0.0
    %164 = vmatpush1.msra.mxu0 %v133
    %165 = vmatprep.subr.mxu0 0.0
    %166 = vmatpush1.msra.mxu0 %v134
    %167 = vmatprep.subr.mxu0 0.0
    %168 = vmatpush1.msra.mxu0 %v135
    %169 = vmatprep.subr.mxu0 0.0
    %170 = vmatpush1.msra.mxu0 %v136
    %171 = vmatprep.subr.mxu0 0.0
    %172 = vmatpush1.msra.mxu0 %v137
    %173 = vmatprep.subr.mxu0 0.0
    %174 = vmatpush1.msra.mxu0 %v138
    %175 = vmatprep.subr.mxu0 0.0
    %176 = vmatpush1.msra.mxu0 %v139
    %177 = vmatprep.subr.mxu0 0.0
    %178 = vmatpush1.msra.mxu0 %v140
    %179 = vmatprep.subr.mxu0 0.0
    %180 = vmatpush1.msra.mxu0 %v141
    %181 = vmatprep.subr.mxu0 0.0
    %182 = vmatpush1.msra.mxu0 0.0
    %183 = vmatprep.subr.mxu0 0.0
    %184 = vmatpush1.msra.mxu0 0.0
    %185 = vmatprep.subr.mxu0 0.0
    %186 = vmatpush1.msra.mxu0 0.0
    %187 = vmatprep.subr.mxu0 0.0
    %188 = vmatpush1.msra.mxu0 0.0
    %189 = vmatprep.subr.mxu0 0.0
    %190 = vmatpush1.msra.mxu0 0.0
    %191 = vmatprep.subr.mxu0 0.0
    %192 = vmatpush1.msra.mxu0 0.0
    %193 = vmatprep.subr.mxu0 0.0
    %194 = vmatpush1.msra.mxu0 0.0
    %195 = vmatprep.subr.mxu0 0.0
    %196 = vmatpush1.msra.mxu0 0.0
    %197 = vmatprep.subr.mxu0 0.0
    %198 = vmatpush1.msra.mxu0 0.0
    %199 = vmatprep.subr.mxu0 0.0
    %200 = vmatpush1.msra.mxu0 0.0
    %201 = vmatprep.subr.mxu0 0.0
    %202 = vmatpush1.msra.mxu0 0.0
    %203 = vmatprep.subr.mxu0 0.0
    %204 = vmatpush1.msra.mxu0 0.0
    %205 = vmatprep.subr.mxu0 0.0
    %206 = vmatpush1.msra.mxu0 0.0
    %207 = vmatprep.subr.mxu0 0.0
    %208 = vmatpush1.msra.mxu0 0.0
    %209 = vmatprep.subr.mxu0 0.0
    %210 = vmatpush1.msra.mxu0 0.0
    %211 = vmatprep.subr.mxu0 0.0
    %212 = vmatpush1.msra.mxu0 0.0
    %213 = vmatprep.mubr.f32.mxu0 0.0
    %214 = vmatmul.mubr.f32.gmra.mrb[0].mxu0 %v124
    %v215 = vpop.f32.mrb[0].mxu0
    %v216 = vadd.f32 %v147, %v215
    %v217 = vpop.f32.mrb[0].mxu0
    %218 = vmatprep.mubr.f32.mxu0 0.0
    %219 = vmatmul.mubr.f32.gmra.mrb[0].mxu0 %v125
    %v220 = vpop.f32.mrb[0].mxu0
    %v221 = vadd.f32 %v147, %v220
    %v222 = vpop.f32.mrb[0].mxu0
    %223 = vdwg.mxu0
    %224 = vst.msk [vmem:[#allocation2] sm:$0xff] %vm34, %v216
    %225 = vst.msk [vmem:[#allocation2 + $0x8] sm:$0xff] %vm34, %v221
    // Predicated region
    $region22: #{feed_forward.1} parent=1 // pred_check
      _
    $region23: #{feed_forward.1} parent=1 // pred_check_branch
      %227 = sbr.rel (0) target = $region25
    $region24: #{feed_forward.1} parent=1 // pred_region
      %s229 = ssub.s32 256, 256
      %230 = vsyncadd [#allocation3], %s229
      %s231 = sshll.u32 [#allocation2], 4
      %s232 = int_to_ptr.vmem [resolvable:$true] %s231
      %237 = dma.vmem_to_hbm [thread:$0]  %s232, 256, %s5, [#allocation3], 128, 128, 8
    $region25: #{feed_forward.1} parent=1 // pred_fallthru
      _
    // Predicated region
    $region26: #{feed_forward.1} parent=1 // pred_check
      _
    $region27: #{feed_forward.1} parent=1 // pred_check_branch
      %239 = sbr.rel (0) target = $region29
    $region28: #{feed_forward.1} parent=1 // pred_region
      %240 = dma.done [#allocation3], 256
    $region29: #{feed_forward.1} parent=1 // pred_fallthru
      _
    %241 = vsyncpa [#allocation3], 1

</llo_original>
